<compile_context>
chip_gen: v7x
topology: tpu7x:2x2x1
jax: 0.10.0
libtpu: 0.0.40
codegen_flags: <defaults>
</compile_context>

<pallas_src>
import jax
import jax.numpy as jnp
from jax.experimental import pallas as pl
from jax.experimental.pallas import tpu as pltpu


def _chomp_copy_kernel(x_ref, o_ref):
    # x_ref, o_ref : identical (TR, TL) blocks -> pure aligned vld/vst copy.
    o_ref[...] = x_ref[...]


def _vmem_budget_bytes():
    """Return (per-buffer block budget, scoped-VMEM limit) per TPU generation."""
    try:
        cap = pltpu.get_tpu_info().vmem_capacity_bytes
    except Exception:
        cap = 64 * 1024 * 1024  # conservative fallback: assume v7x-sized VMEM
    if cap >= 100 * 1024 * 1024:
        # v5e / v6e: 128 MiB physical VMEM -> bigger blocks, explicit headroom.
        return 8 * 1024 * 1024, 64 * 1024 * 1024
    # v7x (64 MiB physical) or unknown: keep 2 specs x 2 bufs x 4 MiB = 16 MiB.
    return 4 * 1024 * 1024, 40 * 1024 * 1024


def chomp1d(x: jax.Array, chomp_size: int) -> jax.Array:
    """Equivalent of Chomp1d(chomp_size)(x) for x of shape (N, C, L).

    Requires chomp_size >= 1 (PyTorch's x[:, :, :-0] would be empty; that
    degenerate case is not supported here).
    """
    assert chomp_size > 0, "chomp_size must be positive"
    n, c, l = x.shape
    l_out = l - chomp_size
    assert l_out > 0, "chomp_size must be smaller than the sequence length"

    # Collapse batch and channels into one row axis (free reshape for NCL).
    rows = n * c
    x2d = x.reshape(rows, l)

    itemsize = jnp.dtype(x.dtype).itemsize
    # Sublane packing: 8 rows for 4-byte, 16 for 2-byte, 32 for 1-byte dtypes.
    sub_pack = max(8, 32 // itemsize)

    budget_bytes, vmem_limit = _vmem_budget_bytes()

    # Lane tile: multiple of 128, capped at 2048 (grow rows instead), no larger
    # than the 128-rounded output length.
    tl = min(2048, pl.cdiv(l_out, 128) * 128)

    # Row tile: fit one block under the per-buffer budget, rounded to the
    # sublane pack, and no larger than needed.
    tr_cap = max(sub_pack, (budget_bytes // (tl * itemsize)) // sub_pack * sub_pack)
    tr = min(tr_cap, pl.cdiv(rows, sub_pack) * sub_pack)

    # Guarantee >= 2 grid steps for non-trivial copies so v7x's two TensorCores
    # both get work (harmless single extra step on 1-TC v5e/v6e).
    total_out_bytes = rows * l_out * itemsize
    if (pl.cdiv(rows, tr) * pl.cdiv(l_out, tl) < 2) and total_out_bytes > (1 << 20):
        if rows > sub_pack:
            tr = pl.cdiv(pl.cdiv(rows, 2), sub_pack) * sub_pack
        elif l_out > 128:
            tl = pl.cdiv(pl.cdiv(l_out, 2), 128) * 128

    grid = (pl.cdiv(rows, tr), pl.cdiv(l_out, tl))

    out2d = pl.pallas_call(
        _chomp_copy_kernel,
        out_shape=jax.ShapeDtypeStruct((rows, l_out), x.dtype),
        grid_spec=pltpu.PrefetchScalarGridSpec(
            num_scalar_prefetch=0,
            grid=grid,
            # Identical block shape + index_map for input and output: the output
            # only has L_out columns, so the trailing length tile is clipped on
            # masked writeback and the chomped tail never reaches the output.
            in_specs=[pl.BlockSpec((tr, tl), lambda r, k: (r, k))],
            out_specs=pl.BlockSpec((tr, tl), lambda r, k: (r, k)),
        ),
        compiler_params=pltpu.CompilerParams(
            dimension_semantics=("parallel", "parallel"),
            vmem_limit_bytes=vmem_limit,
        ),
        cost_estimate=pl.CostEstimate(
            flops=0,
            transcendentals=0,
            bytes_accessed=2 * rows * l_out * itemsize,
        ),
    )(x2d)

    return out2d.reshape(n, c, l_out)


if __name__ == "__main__":
    key = jax.random.PRNGKey(0)

    # Small shapes consistent with a TCN Conv1d output: (batch=2, channels=4, length=16).
    N, C, L = 2, 4, 16
    chomp_size = 3  # == (kernel_size - 1) * dilation for a causal TCN block

    x = jax.random.normal(key, (N, C, L), dtype=jnp.float32)
    y = jax.block_until_ready(chomp1d(x, chomp_size))

    y_ref = x[:, :, :-chomp_size]
    assert y.shape == (N, C, L - chomp_size), y.shape
    assert jnp.array_equal(y, y_ref), "mismatch vs reference slice"

    # Extra correctness check exercising a partial trailing lane tile
    # (l_out % 128 != 0 with chomp_size smaller than the tile remainder).
    x2 = jax.random.normal(jax.random.PRNGKey(0), (2, 4, 300), dtype=jnp.float32)
    y2 = jax.block_until_ready(chomp1d(x2, 5))
    assert jnp.array_equal(y2, x2[:, :, :-5]), "mismatch vs reference slice (partial tile)"

    print("KERNEL_OK")
</pallas_src>

<mosaic_0001>
module attributes {stable_mosaic.version = 11 : i64} {
  func.func @_chomp_copy_kernel(%arg0: i32, %arg1: i32, %arg2: memref<8x128xf32, #tpu.memory_space<vmem>>, %arg3: memref<8x128xf32, #tpu.memory_space<vmem>>) attributes {dimension_semantics = [#tpu.dimension_semantics<parallel>, #tpu.dimension_semantics<parallel>], iteration_bounds = array<i64: 1, 1>, scalar_prefetch = 0 : i64, scratch_operands = 0 : i64, tpu.core_type = #tpu.core_type<tc>, window_params = [{transform_indices = @transform_0, window_bounds = array<i64: 8, 128>}, {transform_indices = @transform_1, window_bounds = array<i64: 8, 128>}]} {
    %c0 = arith.constant 0 : index
    %c0_0 = arith.constant 0 : index
    %0 = vector.load %arg2[%c0, %c0_0] : memref<8x128xf32, #tpu.memory_space<vmem>>, vector<8x128xf32>
    %c0_1 = arith.constant 0 : index
    %c0_2 = arith.constant 0 : index
    %1 = vector.load %arg3[%c0_1, %c0_2] : memref<8x128xf32, #tpu.memory_space<vmem>>, vector<8x128xf32>
    tpu.vector_store %arg3[%c0_1, %c0_2], %0 {strides = array<i32>} : memref<8x128xf32, #tpu.memory_space<vmem>>, vector<8x128xf32>,
    return
  }
  func.func @transform_0(%arg0: i32, %arg1: i32) -> (i32, i32) {
    %c0_i32 = arith.constant 0 : i32
    return %arg0, %arg1 : i32, i32
  }
  func.func @transform_1(%arg0: i32, %arg1: i32) -> (i32, i32) {
    %c0_i32 = arith.constant 0 : i32
    return %arg0, %arg1 : i32, i32
  }
}

</mosaic_0001>

<llo_original>
// kernel: tpu_custom_call.1
$region0: #{tpu_custom_call.1}
  #allocation0 [shape = 'u32[]', space=smem, size = 0x4, offset = 0x4, fixed_abs, tag = 'smem constant byte address 0x4 - core index']
  #allocation1 [shape = 'u32[144,128]{1,0:T(1,128)}', space=vmem, size = 0x12000, scoped, tag = 'internal scratch']
  %s0 = inlined_call_operand.hbm [shape: f32[8,16], index: 0, kind: input, shape index: {}]
  %s1 = inlined_call_operand.hbm [shape: f32[8,13], index: 1, kind: output, shape index: {}]
  %s2 = sld [smem:[#allocation0]]
  $region18: #{tpu_custom_call.1} parent=0
    _
  %s4 = ssub.s32 1, %s2
  %s5 = scalar_select 0, %s4, %s2
  $region1: #{tpu_custom_call.1} parent=0
    #allocation2 [shape = 'u8[4096]{0}', space=vmem, size = 0x1000, scoped, tag = 'input window, operand 0, single buffered']
    #allocation3 [shape = 's32[1]{0}', space=sflag, size = 0x4, scoped, tag = 'scoped memory for tpu_custom_call.1']
    #allocation4 [shape = 's32[1]{0}', space=sflag, size = 0x4, scoped, tag = 'scoped memory for tpu_custom_call.1']
    #allocation5 [shape = 'u8[4096]{0}', space=vmem, size = 0x1000, scoped, tag = 'output window, operand 0, single buffered']
    %6 = vsyncpa [#allocation3], 0
    %7 = vsyncpa [#allocation4], 0
    // Predicated region
    $region2: #{tpu_custom_call.1} parent=1 // pred_check
      _
    $region3: #{tpu_custom_call.1} parent=1 // pred_check_branch
      %9 = sbr.rel (0) target = $region5
    $region4: #{tpu_custom_call.1} parent=1 // pred_region
      %s11 = ssub.s32 128, 128
      %12 = vsyncadd [#allocation3], %s11
      %s14 = sshll.u32 [#allocation2], 4
      %s15 = int_to_ptr.vmem [resolvable:$true] %s14
      %17 = dma.hbm_to_vmem [thread:$0]  %s0, 128, %s15, [#allocation3]
    $region5: #{tpu_custom_call.1} parent=1 // pred_fallthru
      _
    // Predicated region
    $region6: #{tpu_custom_call.1} parent=1 // pred_check
      _
    $region7: #{tpu_custom_call.1} parent=1 // pred_check_branch
      %19 = sbr.rel (0) target = $region9
    $region8: #{tpu_custom_call.1} parent=1 // pred_region
      %20 = dma.done [#allocation3], 128
    $region9: #{tpu_custom_call.1} parent=1 // pred_fallthru
      _
    %v21 = vld [vmem:[#allocation2] sm:$0xff]
    %22 = vst [vmem:[#allocation5] sm:$0xff] %v21
    // Predicated region
    $region10: #{tpu_custom_call.1} parent=1 // pred_check
      _
    $region11: #{tpu_custom_call.1} parent=1 // pred_check_branch
      %24 = sbr.rel (0) target = $region13
    $region12: #{tpu_custom_call.1} parent=1 // pred_region
      %s26 = ssub.s32 128, 128
      %27 = vsyncadd [#allocation4], %s26
      %s29 = sshll.u32 [#allocation5], 4
      %s30 = int_to_ptr.vmem [resolvable:$true] %s29
      %32 = dma.vmem_to_hbm [thread:$0]  %s30, 128, %s1, [#allocation4]
    $region13: #{tpu_custom_call.1} parent=1 // pred_fallthru
      _
    // Predicated region
    $region14: #{tpu_custom_call.1} parent=1 // pred_check
      _
    $region15: #{tpu_custom_call.1} parent=1 // pred_check_branch
      %34 = sbr.rel (0) target = $region17
    $region16: #{tpu_custom_call.1} parent=1 // pred_region
      %35 = dma.done [#allocation4], 128
    $region17: #{tpu_custom_call.1} parent=1 // pred_fallthru
      _
    %36 = vsyncpa [#allocation3], 1
    %37 = vsyncpa [#allocation4], 1

</llo_original>
